<compile_context>
chip_gen: v6e
topology: v6e:2x2x1
jax: 0.10.0
libtpu: 0.0.40
codegen_flags: <defaults>
</compile_context>

<pallas_src>
import functools

import jax
import jax.numpy as jnp
from jax.experimental import pallas as pl
from jax.experimental.pallas import tpu as pltpu


# ----------------------------------------------------------------------------
# Kernel
# ----------------------------------------------------------------------------
def _multi_loss_kernel(logits_ref, labels_ref, soft_ref, out_ref, *,
                       n_rows, needs_mask):
    """Per-tile partial sums for the fused CE + MSE multi-loss.

    logits_ref : VMEM (T, C)   native -- outputs["outputs"] tile
    labels_ref : VMEM (T, 1)   int32  -- batch["targets"] tile
    soft_ref   : VMEM (T, C)   native -- batch["soft_targets"] tile
    out_ref    : VMEM (8, 128) f32    -- [0,0]=sum CE, [0,1]=sum sq-err
    """
    logits = logits_ref[...].astype(jnp.float32)            # (T, C)
    soft_t = soft_ref[...].astype(jnp.float32)               # (T, C)
    labels = labels_ref[...]                                  # (T, 1) int32

    t, c = logits.shape

    if needs_mask:
        # Only compiled in when N % tile_n != 0 (overhanging last block).
        row0 = pl.program_id(0) * t
        ridx = row0 + jax.lax.broadcasted_iota(jnp.int32, (t, 1), 0)  # (T, 1)
        valid = ridx < n_rows                                          # (T, 1)
        # Mask BEFORE max/exp so overhang garbage cannot create inf/NaN.
        logits = jnp.where(valid, logits, 0.0)

    # ---- loss 0: softmax cross-entropy (stable logsumexp, no one-hot) ----
    m = jnp.max(logits, axis=-1, keepdims=True)                    # (T, 1)
    lse = m + jnp.log(jnp.sum(jnp.exp(logits - m), axis=-1, keepdims=True))
    # NOTE: the class-index iota is regenerated per tile on purpose: with a
    # "parallel" grid axis each TensorCore owns its own scratch, so a
    # pid==0-gated one-time init would be unsafe; the iota is one VPU op per
    # vreg and this kernel is DMA-bound.
    cls = jax.lax.broadcasted_iota(jnp.int32, (t, c), 1)           # (T, C)
    picked = jnp.sum(jnp.where(cls == labels, logits, 0.0),
                     axis=-1, keepdims=True)                       # (T, 1)
    ce_rows = lse - picked                                         # (T, 1)

    # ---- loss 1: squared error ----
    diff = logits - soft_t                                         # (T, C)

    if needs_mask:
        ce_rows = jnp.where(valid, ce_rows, 0.0)
        diff = jnp.where(valid, diff, 0.0)

    ce_sum = jnp.sum(ce_rows)                                      # scalar
    se_sum = jnp.sum(diff * diff)                                  # scalar

    # ---- lane-dense per-tile partials: [0,0]=ce_sum, [0,1]=se_sum ----
    lane = jax.lax.broadcasted_iota(jnp.int32, (8, 128), 1)
    sub = jax.lax.broadcasted_iota(jnp.int32, (8, 128), 0)
    first = sub == 0
    out_ref[...] = jnp.where(first & (lane == 0), ce_sum,
                             jnp.where(first & (lane == 1), se_sum, 0.0))


# ----------------------------------------------------------------------------
# Tiling plan (per-generation VMEM budget)
# ----------------------------------------------------------------------------
def _round_up(x, m):
    return ((x + m - 1) // m) * m


def _sublane_multiple(itemsize):
    # 32-bit: 8 rows / vreg sublane group; bf16: 16; int8/fp8: 32.
    return 8 * max(1, 4 // max(int(itemsize), 1))


def _vmem_capacity_bytes():
    try:
        cap = int(getattr(pltpu.get_tpu_info(), "vmem_capacity_bytes", 0))
        if cap > 0:
            return cap
    except Exception:
        pass
    return 64 << 20  # v7x-safe fallback


def _plan_tiling(n, c, logits_dtype, soft_dtype):
    """Returns (tile_n, vmem_limit_bytes)."""
    isz_l = jnp.dtype(logits_dtype).itemsize
    isz_s = jnp.dtype(soft_dtype).itemsize
    sub = max(_sublane_multiple(isz_l), _sublane_multiple(isz_s))

    cap = _vmem_capacity_bytes()
    # v5e/v6e (128 MiB): 96 MiB; v7x (64 MiB): 48 MiB.
    vmem_limit = min(cap * 3 // 4, 96 << 20)
    tile_budget = max(vmem_limit - (4 << 20), 4 << 20)

    # VMEM bytes per batch row:
    #  * double-buffered logits + soft-target tiles (native dtype)
    #  * double-buffered (tile_n, 1) int32 label block -- lane-pads to 128
    #    lanes (512 B/row), must be budgeted or it dominates for small C
    #  * ~10 block-sized f32 kernel temporaries (Mosaic intermediates)
    bytes_per_row = 2 * (c * (isz_l + isz_s) + 512) + 10 * c * 4
    max_rows = max(sub, (tile_budget // bytes_per_row) // sub * sub)

    n_up = _round_up(n, sub)
    tile = min(n_up, max_rows)
    # Keep >= 2 grid steps when the batch allows it so the "parallel" axis can
    # shard across both TensorCores on v7x (mem-bound reduction: ~2x).
    if tile >= n_up and n_up >= 2 * sub:
        tile = _round_up(-(-n_up // 2), sub)
    return max(sub, (tile // sub) * sub), int(vmem_limit)


# ----------------------------------------------------------------------------
# pallas_call wrapper
# ----------------------------------------------------------------------------
@functools.partial(jax.jit, static_argnames=("tile_n", "vmem_limit"))
def _multi_loss_partials(logits, labels2d, soft_targets, *, tile_n, vmem_limit):
    n, c = logits.shape
    num_tiles = -(-n // tile_n)
    needs_mask = (n % tile_n) != 0   # static: compiled out when tiles fit

    grid_spec = pltpu.PrefetchScalarGridSpec(
        num_scalar_prefetch=0,
        grid=(num_tiles,),
        in_specs=[
            pl.BlockSpec((tile_n, c), lambda i: (i, 0)),   # logits
            pl.BlockSpec((tile_n, 1), lambda i: (i, 0)),   # int labels
            pl.BlockSpec((tile_n, c), lambda i: (i, 0)),   # soft targets
        ],
        out_specs=pl.BlockSpec((8, 128), lambda i: (i, 0)),
    )

    cost = pl.CostEstimate(
        flops=int(12 * n * c),
        transcendentals=int(n * c),
        bytes_accessed=int(
            n * c * (logits.dtype.itemsize + soft_targets.dtype.itemsize)
            + n * 4 + num_tiles * 8 * 128 * 4),
    )

    return pl.pallas_call(
        functools.partial(_multi_loss_kernel, n_rows=n, needs_mask=needs_mask),
        out_shape=jax.ShapeDtypeStruct((num_tiles * 8, 128), jnp.float32),
        grid_spec=grid_spec,
        compiler_params=pltpu.CompilerParams(
            dimension_semantics=("parallel",),   # independent tiles -> megacore
            vmem_limit_bytes=int(vmem_limit),
        ),
        cost_estimate=cost,
    )(logits, labels2d, soft_targets)


# ----------------------------------------------------------------------------
# MultiLoss equivalent
# ----------------------------------------------------------------------------
class MultiLossPallas:
    """JAX/Pallas equivalent of theseus MultiLoss with two fused child losses."""

    # TODO(synk): the PyTorch MultiLoss accepts arbitrary child loss modules;
    # here two representative losses (CE + MSE) are fused into one kernel.

    def __init__(self, weights=None, min_pallas_elements=0):
        n_losses = 2
        self.weights = [1.0] * n_losses if weights is None else list(weights)
        # For tiny problems XLA's fused jnp path beats pallas_call overhead;
        # set e.g. min_pallas_elements=1<<17 in production to dispatch there.
        self.min_pallas_elements = min_pallas_elements

    def _small_path(self, logits, labels, soft_targets):
        logits = logits.astype(jnp.float32)
        soft_targets = soft_targets.astype(jnp.float32)
        logp = jax.nn.log_softmax(logits, axis=-1)
        ce = -jnp.mean(jnp.take_along_axis(logp, labels[:, None], axis=-1))
        mse = jnp.mean((logits - soft_targets) ** 2)
        total = self.weights[0] * ce + self.weights[1] * mse
        return total, {"CE": ce, "MSE": mse, "Total": total}

    def __call__(self, outputs, batch):
        logits = outputs["outputs"]                       # (N, C), native dtype
        labels = batch["targets"].astype(jnp.int32)       # (N,)
        soft_targets = batch["soft_targets"]              # (N, C), native dtype
        n, c = logits.shape

        if n * c < self.min_pallas_elements:
            return self._small_path(logits, labels, soft_targets)

        tile_n, vmem_limit = _plan_tiling(n, c, logits.dtype, soft_targets.dtype)

        # No full-array padding: the grid's last block may overhang N and the
        # kernel masks it (needs_mask is compiled out when N % tile_n == 0).
        labels2d = labels.reshape(n, 1)
        partials = _multi_loss_partials(
            logits, labels2d, soft_targets, tile_n=tile_n, vmem_limit=vmem_limit)

        num_tiles = -(-n // tile_n)
        partials = partials.reshape(num_tiles, 8, 128)

        # 3-scalar finalize in the wrapper (keeps the grid axis parallel).
        ce = jnp.sum(partials[:, 0, 0]) / n
        mse = jnp.sum(partials[:, 0, 1]) / (n * c)
        total = self.weights[0] * ce + self.weights[1] * mse
        loss_dict = {"CE": ce, "MSE": mse, "Total": total}
        return total, loss_dict


# ----------------------------------------------------------------------------
# Reference + demo
# ----------------------------------------------------------------------------
def _reference(logits, labels, soft_targets, weights):
    logits = logits.astype(jnp.float32)
    soft_targets = soft_targets.astype(jnp.float32)
    logp = jax.nn.log_softmax(logits, axis=-1)
    ce = -jnp.mean(jnp.take_along_axis(logp, labels[:, None], axis=-1))
    mse = jnp.mean((logits - soft_targets) ** 2)
    return weights[0] * ce + weights[1] * mse, ce, mse


if __name__ == "__main__":
    key = jax.random.PRNGKey(0)
    k1, k2, k3 = jax.random.split(key, 3)

    N, C = 8, 32  # batch=8, classes=32
    logits = jax.random.normal(k1, (N, C), dtype=jnp.float32)
    labels = jax.random.randint(k2, (N,), 0, C, dtype=jnp.int32)
    soft_targets = jax.random.normal(k3, (N, C), dtype=jnp.float32)

    outputs = {"outputs": logits}
    batch = {"targets": labels, "soft_targets": soft_targets}

    multi_loss = MultiLossPallas()  # default weights = [1.0, 1.0], Pallas path
    total, loss_dict = multi_loss(outputs, batch)
    total = jax.block_until_ready(total)

    ref_total, ref_ce, ref_mse = _reference(
        logits, labels, soft_targets, multi_loss.weights
    )
    assert jnp.allclose(total, ref_total, atol=1e-5, rtol=1e-5), (total, ref_total)
    assert jnp.allclose(loss_dict["CE"], ref_ce, atol=1e-5, rtol=1e-5)
    assert jnp.allclose(loss_dict["MSE"], ref_mse, atol=1e-5, rtol=1e-5)

    print("KERNEL_OK")
</pallas_src>

<mosaic_0001>
module attributes {stable_mosaic.version = 11 : i64} {
  func.func @_multi_loss_kernel(%arg0: i32, %arg1: memref<8x32xf32, #tpu.memory_space<vmem>>, %arg2: memref<8x1xi32, #tpu.memory_space<vmem>>, %arg3: memref<8x32xf32, #tpu.memory_space<vmem>>, %arg4: memref<8x128xf32, #tpu.memory_space<vmem>>) attributes {dimension_semantics = [#tpu.dimension_semantics<parallel>], iteration_bounds = array<i64: 1>, scalar_prefetch = 0 : i64, scratch_operands = 0 : i64, tpu.core_type = #tpu.core_type<tc>, window_params = [{transform_indices = @transform_0, window_bounds = array<i64: 8, 32>}, {transform_indices = @transform_1, window_bounds = array<i64: 8, 1>}, {transform_indices = @transform_2, window_bounds = array<i64: 8, 32>}, {transform_indices = @transform_3, window_bounds = array<i64: 8, 128>}]} {
    %c0 = arith.constant 0 : index
    %c0_0 = arith.constant 0 : index
    %0 = vector.load %arg1[%c0, %c0_0] : memref<8x32xf32, #tpu.memory_space<vmem>>, vector<8x32xf32>
    %c0_1 = arith.constant 0 : index
    %c0_2 = arith.constant 0 : index
    %1 = vector.load %arg3[%c0_1, %c0_2] : memref<8x32xf32, #tpu.memory_space<vmem>>, vector<8x32xf32>
    %c0_3 = arith.constant 0 : index
    %c0_4 = arith.constant 0 : index
    %2 = vector.load %arg2[%c0_3, %c0_4] : memref<8x1xi32, #tpu.memory_space<vmem>>, vector<8x1xi32>
    %cst = arith.constant dense<0xFF800000> : vector<8xf32>
    %3 = vector.multi_reduction <maximumf>, %0, %cst [1] : vector<8x32xf32> to vector<8xf32>
    %4 = vector.shape_cast %3 : vector<8xf32> to vector<8x1xf32>
    %5 = vector.broadcast %4 : vector<8x1xf32> to vector<8x32xf32>
    %6 = arith.subf %0, %5 : vector<8x32xf32>
    %7 = math.exp %6 : vector<8x32xf32>
    %cst_5 = arith.constant dense<0.000000e+00> : vector<8xf32>
    %8 = vector.multi_reduction <add>, %7, %cst_5 [1] : vector<8x32xf32> to vector<8xf32>
    %9 = vector.shape_cast %8 : vector<8xf32> to vector<8x1xf32>
    %10 = math.log %9 : vector<8x1xf32>
    %11 = arith.addf %4, %10 : vector<8x1xf32>
    %12 = tpu.iota {dimensions = array<i32: 1>} : vector<8x32xi32>
    %13 = vector.broadcast %2 : vector<8x1xi32> to vector<8x32xi32>
    %14 = arith.cmpi eq, %12, %13 : vector<8x32xi32>
    %cst_6 = arith.constant 0.000000e+00 : f32
    %15 = vector.broadcast %cst_6 : f32 to vector<8x32xf32>
    %16 = arith.select %14, %0, %15 : vector<8x32xi1>, vector<8x32xf32>
    %cst_7 = arith.constant dense<0.000000e+00> : vector<8xf32>
    %17 = vector.multi_reduction <add>, %16, %cst_7 [1] : vector<8x32xf32> to vector<8xf32>
    %18 = vector.shape_cast %17 : vector<8xf32> to vector<8x1xf32>
    %19 = arith.subf %11, %18 : vector<8x1xf32>
    %20 = arith.subf %0, %1 : vector<8x32xf32>
    %21 = vector.shape_cast %19 : vector<8x1xf32> to vector<1x8x1xf32>
    %cst_8 = arith.constant dense<0.000000e+00> : vector<1xf32>
    %22 = vector.multi_reduction <add>, %21, %cst_8 [1, 2] : vector<1x8x1xf32> to vector<1xf32>
    %23 = vector.shape_cast %22 : vector<1xf32> to vector<1x1x1xf32>
    %24 = vector.extract %23[0, 0, 0] : f32 from vector<1x1x1xf32>
    %25 = arith.mulf %20, %20 : vector<8x32xf32>
    %26 = vector.shape_cast %25 : vector<8x32xf32> to vector<1x8x32xf32>
    %cst_9 = arith.constant dense<0.000000e+00> : vector<1xf32>
    %27 = vector.multi_reduction <add>, %26, %cst_9 [1, 2] : vector<1x8x32xf32> to vector<1xf32>
    %28 = vector.shape_cast %27 : vector<1xf32> to vector<1x1x1xf32>
    %29 = vector.extract %28[0, 0, 0] : f32 from vector<1x1x1xf32>
    %30 = tpu.iota {dimensions = array<i32: 1>} : vector<8x128xi32>
    %31 = tpu.iota {dimensions = array<i32: 0>} : vector<8x128xi32>
    %c0_i32 = arith.constant 0 : i32
    %32 = vector.broadcast %c0_i32 : i32 to vector<8x128xi32>
    %33 = arith.cmpi eq, %31, %32 : vector<8x128xi32>
    %c0_i32_10 = arith.constant 0 : i32
    %34 = vector.broadcast %c0_i32_10 : i32 to vector<8x128xi32>
    %35 = arith.cmpi eq, %30, %34 : vector<8x128xi32>
    %36 = arith.andi %33, %35 : vector<8x128xi1>
    %c1_i32 = arith.constant 1 : i32
    %37 = vector.broadcast %c1_i32 : i32 to vector<8x128xi32>
    %38 = arith.cmpi eq, %30, %37 : vector<8x128xi32>
    %39 = arith.andi %33, %38 : vector<8x128xi1>
    %cst_11 = arith.constant 0.000000e+00 : f32
    %40 = vector.broadcast %29 : f32 to vector<8x128xf32>
    %41 = vector.broadcast %cst_11 : f32 to vector<8x128xf32>
    %42 = arith.select %39, %40, %41 : vector<8x128xi1>, vector<8x128xf32>
    %43 = vector.broadcast %24 : f32 to vector<8x128xf32>
    %44 = arith.select %36, %43, %42 : vector<8x128xi1>, vector<8x128xf32>
    %c0_12 = arith.constant 0 : index
    %c0_13 = arith.constant 0 : index
    %45 = vector.load %arg4[%c0_12, %c0_13] : memref<8x128xf32, #tpu.memory_space<vmem>>, vector<8x128xf32>
    tpu.vector_store %arg4[%c0_12, %c0_13], %44 {strides = array<i32>} : memref<8x128xf32, #tpu.memory_space<vmem>>, vector<8x128xf32>,
    return
  }
  func.func @transform_0(%arg0: i32) -> (i32, i32) {
    %c0_i32 = arith.constant 0 : i32
    %c0_i32_0 = arith.constant 0 : i32
    return %arg0, %c0_i32 : i32, i32
  }
  func.func @transform_1(%arg0: i32) -> (i32, i32) {
    %c0_i32 = arith.constant 0 : i32
    %c0_i32_0 = arith.constant 0 : i32
    return %arg0, %c0_i32 : i32, i32
  }
  func.func @transform_2(%arg0: i32) -> (i32, i32) {
    %c0_i32 = arith.constant 0 : i32
    %c0_i32_0 = arith.constant 0 : i32
    return %arg0, %c0_i32 : i32, i32
  }
  func.func @transform_3(%arg0: i32) -> (i32, i32) {
    %c0_i32 = arith.constant 0 : i32
    %c0_i32_0 = arith.constant 0 : i32
    return %arg0, %c0_i32 : i32, i32
  }
}

</mosaic_0001>

<llo_original>
// kernel: _multi_loss_partials.1
$region0: #{_multi_loss_partials.1}
  #allocation0 [shape = 'u32[]', space=smem, size = 0x4, offset = 0x4, fixed_abs, tag = 'smem constant byte address 0x4 - core index']
  #allocation1 [shape = 'u32[144,128]{1,0:T(1,128)}', space=vmem, size = 0x12000, scoped, tag = 'internal scratch']
  %s0 = inlined_call_operand.vmem [shape: f32[8,32], index: 0, kind: input, shape index: {}]
  %s1 = inlined_call_operand.vmem [shape: s32[8,1], index: 1, kind: input, shape index: {}]
  %s2 = inlined_call_operand.hbm [shape: f32[8,32], index: 2, kind: input, shape index: {}]
  %s3 = inlined_call_operand.hbm [shape: f32[8,128], index: 3, kind: output, shape index: {}]
  %s4 = sld [smem:[#allocation0]]
  $region26: #{_multi_loss_partials.1} parent=0
    _
  %s6 = ssub.s32 1, %s4
  %s7 = scalar_select 0, %s6, %s4
  $region1: #{_multi_loss_partials.1} parent=0
    #allocation2 [shape = 'u8[4096]{0}', space=vmem, size = 0x1000, scoped, tag = 'input window, operand 2, single buffered']
    #allocation3 [shape = 's32[1]{0}', space=sflag, size = 0x4, scoped, tag = 'scoped memory for _multi_loss_partials.1']
    #allocation4 [shape = 's32[1]{0}', space=sflag, size = 0x4, scoped, tag = 'scoped memory for _multi_loss_partials.1']
    #allocation5 [shape = 'u8[4096]{0}', space=vmem, size = 0x1000, scoped, tag = 'output window, operand 0, single buffered']
    %8 = vsyncpa [#allocation3], 0
    %9 = vsyncpa [#allocation4], 0
    // Predicated region
    $region2: #{_multi_loss_partials.1} parent=1 // pred_check
      _
    $region3: #{_multi_loss_partials.1} parent=1 // pred_check_branch
      %11 = sbr.rel (0) target = $region5
    $region4: #{_multi_loss_partials.1} parent=1 // pred_region
      _
    $region5: #{_multi_loss_partials.1} parent=1 // pred_fallthru
      _
    // Predicated region
    $region6: #{_multi_loss_partials.1} parent=1 // pred_check
      _
    $region7: #{_multi_loss_partials.1} parent=1 // pred_check_branch
      %13 = sbr.rel (0) target = $region9
    $region8: #{_multi_loss_partials.1} parent=1 // pred_region
      _
    $region9: #{_multi_loss_partials.1} parent=1 // pred_fallthru
      _
    // Predicated region
    $region10: #{_multi_loss_partials.1} parent=1 // pred_check
      _
    $region11: #{_multi_loss_partials.1} parent=1 // pred_check_branch
      %15 = sbr.rel (0) target = $region13
    $region12: #{_multi_loss_partials.1} parent=1 // pred_region
      %s17 = ssub.s32 128, 128
      %18 = vsyncadd [#allocation3], %s17
      %s20 = sshll.u32 [#allocation2], 4
      %s21 = int_to_ptr.vmem [resolvable:$true] %s20
      %23 = dma.hbm_to_vmem [thread:$0]  %s2, 128, %s21, [#allocation3]
    $region13: #{_multi_loss_partials.1} parent=1 // pred_fallthru
      _
    // Predicated region
    $region14: #{_multi_loss_partials.1} parent=1 // pred_check
      _
    $region15: #{_multi_loss_partials.1} parent=1 // pred_check_branch
      %25 = sbr.rel (0) target = $region17
    $region16: #{_multi_loss_partials.1} parent=1 // pred_region
      %26 = dma.done [#allocation3], 128
    $region17: #{_multi_loss_partials.1} parent=1 // pred_fallthru
      _
    %v27 = vld [vmem:[%s0] sm:$0xff]
    %v28 = vld [vmem:[#allocation2] sm:$0xff]
    %v29 = vld [vmem:[%s1] sm:$0xff]
    %vm30 = vcmask 261120
    %v31 = vsel %vm30, %v27, -inf
    %32 = vmax.xlane.f32.xlu0 %v31
    %v33 = vpop.xlane.xlu0 %32
    %v34 = vsub.f32 %v27, %v33
    %v35 = vmul.f32 %v34, 1.442695
    %v36 = vpow.pop %v35
    %v37 = vsel %vm30, %v36, 0.0
    %38 = vadd.xlane.f32.xlu0 %v37
    %v39 = vpop.xlane.xlu0 %38
    %v40 = vlog2.pop %v39
    %v41 = vmul.f32 %v40, 0.6931472
    %v42 = vadd.f32 %v33, %v41
    %v43 = vlaneseq
    %v44 = vand.u32 %v43, 127
    %45 = vset.pattern.permute.xlu0 0
    %46 = vperm.xlu0 %45, %v29
    %v47 = vpop.permute.xlu0 %46
    %vm48 = vcmp.eq.s32.totalorder %v44, %v47
    %v49 = vsel %vm48, %v27, 0.0
    %v50 = vsel %vm30, %v49, 0.0
    %51 = vadd.xlane.f32.xlu0 %v50
    %v52 = vpop.xlane.xlu0 %51
    %v53 = vsub.f32 %v42, %v52
    %v54 = vsub.f32 %v27, %v28
    %vm55 = vcmask 7168
    %v56 = vsel %vm55, %v53, 0.0
    %57 = vadd.xlane.f32.xlu0 %v56
    %v58 = vpop.xlane.xlu0 %57
    %v59 = vrot.slane %v58, 4
    %v60 = vadd.f32 %v58, %v59
    %v61 = vrot.slane %v60, 2
    %v62 = vadd.f32 %v60, %v61
    %v63 = vrot.slane %v62, 1
    %v64 = vadd.f32 %v62, %v63
    %s65 = vtos %v64
    %v66 = vmul.f32 %v54, %v54
    %v67 = vsel %vm30, %v66, 0.0
    %68 = vadd.xlane.f32.xlu0 %v67
    %v69 = vpop.xlane.xlu0 %68
    %v70 = vrot.slane %v69, 4
    %v71 = vadd.f32 %v69, %v70
    %v72 = vrot.slane %v71, 2
    %v73 = vadd.f32 %v71, %v72
    %v74 = vrot.slane %v73, 1
    %v75 = vadd.f32 %v73, %v74
    %s76 = vtos %v75
    %v77 = vlaneseq
    %v78 = vshrl.u32 %v77, 7
    %vm79 = vcmp.eq.s32.totalorder %v78, 0
    %vm80 = vcmp.eq.s32.totalorder %v44, 0
    %vm81 = vmand %vm79, %vm80
    %vm82 = vcmp.eq.s32.totalorder %v44, 1
    %vm83 = vmand %vm79, %vm82
    %v84 = vstv %s76
    %v85 = vsel %vm83, %v84, 0.0
    %v86 = vstv %s65
    %v87 = vsel %vm81, %v86, %v85
    %88 = vst [vmem:[#allocation5] sm:$0xff] %v87
    // Predicated region
    $region18: #{_multi_loss_partials.1} parent=1 // pred_check
      _
    $region19: #{_multi_loss_partials.1} parent=1 // pred_check_branch
      %90 = sbr.rel (0) target = $region21
    $region20: #{_multi_loss_partials.1} parent=1 // pred_region
      %s92 = ssub.s32 128, 128
      %93 = vsyncadd [#allocation4], %s92
      %s95 = sshll.u32 [#allocation5], 4
      %s96 = int_to_ptr.vmem [resolvable:$true] %s95
      %98 = dma.vmem_to_hbm [thread:$0]  %s96, 128, %s3, [#allocation4]
    $region21: #{_multi_loss_partials.1} parent=1 // pred_fallthru
      _
    // Predicated region
    $region22: #{_multi_loss_partials.1} parent=1 // pred_check
      _
    $region23: #{_multi_loss_partials.1} parent=1 // pred_check_branch
      %100 = sbr.rel (0) target = $region25
    $region24: #{_multi_loss_partials.1} parent=1 // pred_region
      %101 = dma.done [#allocation4], 128
    $region25: #{_multi_loss_partials.1} parent=1 // pred_fallthru
      _
    %102 = vsyncpa [#allocation3], 1
    %103 = vsyncpa [#allocation4], 1

</llo_original>
